<compile_context>
chip_gen: v5e
topology: v5e:2x2
jax: 0.10.0
libtpu: 0.0.40
codegen_flags: <defaults>
</compile_context>

<pallas_src>
import jax
import jax.numpy as jnp
from jax import lax
from jax.experimental import pallas as pl
from jax.experimental.pallas import tpu as pltpu

BN_EPS = 1e-5


def _round_up(x, m):
    return ((x + m - 1) // m) * m


def _choose_batch_tile(batch, device_kind):
    """Generation-aware batch tile (always a multiple of 16 for bf16 sublane packing)."""
    kind = device_kind.lower()
    cap = 128 if "v5" in kind else 256          # v5e MXU is 128-row; v6e/v7x take 256
    if "v7" in kind and batch > 128:
        # >=2 grid steps, each 128-aligned, so both v7x TensorCores engage and the
        # lane-dense (1, TB) output block stays 128-lane aligned.
        return max(16, min(cap, _round_up(pl.cdiv(batch, 2), 128)))
    return max(16, min(cap, _round_up(batch, 16)))


def value_head_kernel(consts_ref, x_ref, w1_ref, b1_ref, w2_ref, out_ref):
    """Fused ValueHead forward for one batch tile.

    consts_ref : SMEM [C+2]       [alpha_0..alpha_{C-1}, beta0, lin2_bias]
                                  alpha = bn_gamma*rsqrt(var+eps)*conv_w (folded conv+BN scale)
                                  beta0 = bn_gamma*rsqrt(var+eps)*(conv_b-mean) + bn_beta
    x_ref      : VMEM [C, TB, HW] input activations, channel-leading, bf16
    w1_ref     : VMEM [HW, 256]   linear1 weight (transposed), bf16, VMEM-resident
    b1_ref     : VMEM [1, 256]    linear1 bias (f32)
    w2_ref     : VMEM [1, 256]    linear2 weight (f32)
    out_ref    : VMEM [1, TB]     lane-dense output tile
    """
    C = x_ref.shape[0]
    beta0 = consts_ref[C]
    b2 = consts_ref[C + 1]

    # --- conv1x1 + BN(eval) folded: y = relu(sum_c alpha_c * x[c] + beta0) ------------
    # x_ref[c] is a contiguous leading-axis slice (pure vld); f32 scalar * bf16 tile
    # upcasts the accumulate to f32 on the VPU.
    acc = consts_ref[0] * x_ref[0]
    for c in range(1, C):  # C is small & static
        acc = acc + consts_ref[c] * x_ref[c]
    y = jnp.maximum(acc + beta0, 0.0)  # [TB, HW] f32  == Flatten(x) fed to linear1

    # --- linear1 on the MXU: bf16 x bf16 -> f32 accumulate ----------------------------
    h = jnp.dot(
        y.astype(jnp.bfloat16), w1_ref[...], preferred_element_type=jnp.float32
    )
    h = jnp.maximum(h + b1_ref[...], 0.0)  # [TB, 256]

    # --- linear2 + tanh, produced lane-dense as [1, TB] -------------------------------
    z = lax.dot_general(
        w2_ref[...], h,
        dimension_numbers=(((1,), (1,)), ((), ())),
        preferred_element_type=jnp.float32,
    )  # [1, TB]
    out_ref[...] = jnp.tanh(z + b2)


def value_head_forward(x_nchw, params):
    """x_nchw: [B, C, H, W] float32; params: dict of weights. Returns [B, 1] float32."""
    B, C, H, W = x_nchw.shape
    HW = H * W
    HIDDEN = params["lin1_w_t"].shape[1]

    # ---- fold conv1x1 + BatchNorm(eval) into per-channel scale + single bias ---------
    g = params["bn_gamma"] * lax.rsqrt(params["bn_var"] + BN_EPS)
    alpha = (g * params["conv_w"]).astype(jnp.float32)                      # [C]
    beta0 = g * (params["conv_b"] - params["bn_mean"]) + params["bn_beta"]  # scalar
    consts = jnp.concatenate(
        [alpha, jnp.reshape(beta0, (1,)), jnp.reshape(params["lin2_b"], (1,))]
    ).astype(jnp.float32)                                                   # [C+2]

    # ---- channel-leading layout with the bf16 cast fused into the same transpose -----
    # (halves the dominant x HBM traffic; kernel is x-bandwidth bound at real batches)
    x = jnp.transpose(x_nchw.reshape(B, C, HW), (1, 0, 2)).astype(jnp.bfloat16)  # [C,B,HW]
    # TODO(synk): for peak bandwidth the producer should emit channel-leading bf16
    #             directly so this extra HBM pass over x disappears entirely.

    TB = _choose_batch_tile(B, jax.devices()[0].device_kind)
    B_pad = _round_up(B, TB)
    if B_pad != B:
        x = jnp.pad(x, ((0, 0), (0, B_pad - B), (0, 0)))
    nb = B_pad // TB

    # ---- weights: dominant w1 traffic in bf16; small b1/w2 stay f32 ------------------
    w1_bf16 = params["lin1_w_t"].astype(jnp.bfloat16)        # [HW, 256]
    b1 = params["lin1_b"].astype(jnp.float32)                # [1, 256]
    w2 = params["lin2_w"].astype(jnp.float32)                # [1, 256]

    cost = pl.CostEstimate(
        flops=2 * B_pad * HW * HIDDEN + 2 * B_pad * HIDDEN + 2 * B_pad * C * HW,
        transcendentals=B_pad,
        bytes_accessed=C * B_pad * HW * 2 + HW * HIDDEN * 2 + B_pad * 4,
    )

    out = pl.pallas_call(
        value_head_kernel,
        out_shape=jax.ShapeDtypeStruct((1, B_pad), jnp.float32),
        grid_spec=pltpu.PrefetchScalarGridSpec(
            num_scalar_prefetch=1,          # consts -> SMEM
            grid=(nb,),
            in_specs=[
                # x: tiled along batch (bf16)
                pl.BlockSpec((C, TB, HW), lambda i, c: (0, i, 0)),
                # weights: constant index_map -> DMA'd once, VMEM-resident across grid
                pl.BlockSpec((HW, HIDDEN), lambda i, c: (0, 0)),
                pl.BlockSpec((1, HIDDEN), lambda i, c: (0, 0)),
                pl.BlockSpec((1, HIDDEN), lambda i, c: (0, 0)),
            ],
            # lane-dense output: unmasked vst, 128-aligned whenever nb > 1
            out_specs=pl.BlockSpec((1, TB), lambda i, c: (0, i)),
        ),
        compiler_params=pltpu.CompilerParams(
            dimension_semantics=("parallel",),   # batch tiles independent (megacore on v7x)
        ),
        cost_estimate=cost,
    )(consts, x, w1_bf16, b1, w2)

    # padded batch rows produce tanh(garbage) but are sliced off here
    return out[0, :B].reshape(B, 1)


def reference_forward(x_nchw, params):
    """Pure-JAX reference mirroring the PyTorch module (BN in eval mode), full f32."""
    B, C, H, W = x_nchw.shape
    x = x_nchw.astype(jnp.float32)
    conv = jnp.einsum("bchw,c->bhw", x, params["conv_w"]) + params["conv_b"]  # [B,H,W]
    y = params["bn_gamma"] * (conv - params["bn_mean"]) * lax.rsqrt(
        params["bn_var"] + BN_EPS
    ) + params["bn_beta"]
    y = jnp.maximum(y, 0.0).reshape(B, H * W)       # Flatten
    h = jnp.maximum(y @ params["lin1_w_t"] + params["lin1_b"], 0.0)
    z = jnp.sum(h * params["lin2_w"], axis=-1, keepdims=True) + params["lin2_b"]
    return jnp.tanh(z)


def init_params(key, channels, program_size):
    hw = program_size ** 2
    hidden = 256
    ks = jax.random.split(key, 6)
    return {
        "conv_w": 0.1 * jax.random.normal(ks[0], (channels,), jnp.float32),
        "conv_b": jnp.float32(0.05),
        "bn_gamma": jnp.float32(1.1),
        "bn_beta": jnp.float32(-0.02),
        "bn_mean": jnp.float32(0.03),
        "bn_var": jnp.float32(0.9),
        "lin1_w_t": 0.05 * jax.random.normal(ks[1], (hw, hidden), jnp.float32),
        "lin1_b": 0.01 * jax.random.normal(ks[2], (1, hidden), jnp.float32),
        "lin2_w": 0.05 * jax.random.normal(ks[3], (1, hidden), jnp.float32),
        "lin2_b": jnp.float32(0.02),
    }


if __name__ == "__main__":
    B, C, P = 2, 4, 16  # batch, channels, program_size  -> x: [2, 4, 16, 16]
    key = jax.random.PRNGKey(0)
    k_x, k_p = jax.random.split(key)
    x = jax.random.normal(k_x, (B, C, P, P), jnp.float32)
    params = init_params(k_p, C, P)

    out = value_head_forward(x, params)
    out = jax.block_until_ready(out)

    ref = reference_forward(x, params)
    assert out.shape == (B, 1)
    # bf16 x + bf16 w1 on the dominant matmul -> relaxed tolerance vs. the f32 reference.
    assert jnp.allclose(out, ref, atol=2e-2, rtol=2e-2), (out, ref)
    print("KERNEL_OK")
</pallas_src>

<mosaic_0001>
module attributes {stable_mosaic.version = 11 : i64} {
  func.func @value_head_kernel(%arg0: i32, %arg1: memref<6xf32, #tpu.memory_space<smem>>, %arg2: memref<4x16x256xbf16, #tpu.memory_space<vmem>>, %arg3: memref<256x256xbf16, #tpu.memory_space<vmem>>, %arg4: memref<1x256xf32, #tpu.memory_space<vmem>>, %arg5: memref<1x256xf32, #tpu.memory_space<vmem>>, %arg6: memref<1x16xf32, #tpu.memory_space<vmem>>) attributes {dimension_semantics = [#tpu.dimension_semantics<parallel>], iteration_bounds = array<i64: 1>, scalar_prefetch = 1 : i64, scratch_operands = 0 : i64, tpu.core_type = #tpu.core_type<tc>, window_params = [{transform_indices = @transform_0, window_bounds = array<i64: 4, 16, 256>}, {pipeline_mode = #tpu.pipeline_mode<synchronous>, transform_indices = @transform_1, window_bounds = array<i64: 256, 256>}, {pipeline_mode = #tpu.pipeline_mode<synchronous>, transform_indices = @transform_2, window_bounds = array<i64: 1, 256>}, {pipeline_mode = #tpu.pipeline_mode<synchronous>, transform_indices = @transform_3, window_bounds = array<i64: 1, 256>}, {transform_indices = @transform_4, window_bounds = array<i64: 1, 16>}]} {
    %c4 = arith.constant 4 : index
    %0 = memref.load %arg1[%c4] : memref<6xf32, #tpu.memory_space<smem>>
    %c5 = arith.constant 5 : index
    %1 = memref.load %arg1[%c5] : memref<6xf32, #tpu.memory_space<smem>>
    %c0 = arith.constant 0 : index
    %2 = memref.load %arg1[%c0] : memref<6xf32, #tpu.memory_space<smem>>
    %c0_0 = arith.constant 0 : index
    %c0_1 = arith.constant 0 : index
    %c0_2 = arith.constant 0 : index
    %3 = vector.load %arg2[%c0_0, %c0_1, %c0_2] : memref<4x16x256xbf16, #tpu.memory_space<vmem>>, vector<1x16x256xbf16>
    %4 = vector.shape_cast %3 : vector<1x16x256xbf16> to vector<16x256xbf16>
    %5 = arith.extf %4 : vector<16x256xbf16> to vector<16x256xf32>
    %6 = vector.broadcast %2 : f32 to vector<16x256xf32>
    %7 = arith.mulf %6, %5 : vector<16x256xf32>
    %c1 = arith.constant 1 : index
    %8 = memref.load %arg1[%c1] : memref<6xf32, #tpu.memory_space<smem>>
    %c1_3 = arith.constant 1 : index
    %c0_4 = arith.constant 0 : index
    %c0_5 = arith.constant 0 : index
    %9 = vector.load %arg2[%c1_3, %c0_4, %c0_5] : memref<4x16x256xbf16, #tpu.memory_space<vmem>>, vector<1x16x256xbf16>
    %10 = vector.shape_cast %9 : vector<1x16x256xbf16> to vector<16x256xbf16>
    %11 = arith.extf %10 : vector<16x256xbf16> to vector<16x256xf32>
    %12 = vector.broadcast %8 : f32 to vector<16x256xf32>
    %13 = arith.mulf %12, %11 : vector<16x256xf32>
    %14 = arith.addf %7, %13 : vector<16x256xf32>
    %c2 = arith.constant 2 : index
    %15 = memref.load %arg1[%c2] : memref<6xf32, #tpu.memory_space<smem>>
    %c2_6 = arith.constant 2 : index
    %c0_7 = arith.constant 0 : index
    %c0_8 = arith.constant 0 : index
    %16 = vector.load %arg2[%c2_6, %c0_7, %c0_8] : memref<4x16x256xbf16, #tpu.memory_space<vmem>>, vector<1x16x256xbf16>
    %17 = vector.shape_cast %16 : vector<1x16x256xbf16> to vector<16x256xbf16>
    %18 = arith.extf %17 : vector<16x256xbf16> to vector<16x256xf32>
    %19 = vector.broadcast %15 : f32 to vector<16x256xf32>
    %20 = arith.mulf %19, %18 : vector<16x256xf32>
    %21 = arith.addf %14, %20 : vector<16x256xf32>
    %c3 = arith.constant 3 : index
    %22 = memref.load %arg1[%c3] : memref<6xf32, #tpu.memory_space<smem>>
    %c3_9 = arith.constant 3 : index
    %c0_10 = arith.constant 0 : index
    %c0_11 = arith.constant 0 : index
    %23 = vector.load %arg2[%c3_9, %c0_10, %c0_11] : memref<4x16x256xbf16, #tpu.memory_space<vmem>>, vector<1x16x256xbf16>
    %24 = vector.shape_cast %23 : vector<1x16x256xbf16> to vector<16x256xbf16>
    %25 = arith.extf %24 : vector<16x256xbf16> to vector<16x256xf32>
    %26 = vector.broadcast %22 : f32 to vector<16x256xf32>
    %27 = arith.mulf %26, %25 : vector<16x256xf32>
    %28 = arith.addf %21, %27 : vector<16x256xf32>
    %29 = vector.broadcast %0 : f32 to vector<16x256xf32>
    %30 = arith.addf %28, %29 : vector<16x256xf32>
    %cst = arith.constant 0.000000e+00 : f32
    %31 = vector.broadcast %cst : f32 to vector<16x256xf32>
    %32 = arith.maximumf %30, %31 : vector<16x256xf32>
    %33 = arith.truncf %32 : vector<16x256xf32> to vector<16x256xbf16>
    %c0_12 = arith.constant 0 : index
    %c0_13 = arith.constant 0 : index
    %34 = vector.load %arg3[%c0_12, %c0_13] : memref<256x256xbf16, #tpu.memory_space<vmem>>, vector<256x256xbf16>
    %cst_14 = arith.constant dense<0.000000e+00> : vector<16x256xf32>
    %35 = tpu.matmul %33, %34, %cst_14 {dimension_numbers = #tpu.dot_dimension_numbers<[1], [0], [0], [1], [0, 0, 1, 1], [], []>} : vector<16x256xbf16>, vector<256x256xbf16>, vector<16x256xf32> -> vector<16x256xf32>
    %c0_15 = arith.constant 0 : index
    %c0_16 = arith.constant 0 : index
    %36 = vector.load %arg4[%c0_15, %c0_16] : memref<1x256xf32, #tpu.memory_space<vmem>>, vector<1x256xf32>
    %37 = vector.broadcast %36 : vector<1x256xf32> to vector<16x256xf32>
    %38 = arith.addf %35, %37 : vector<16x256xf32>
    %cst_17 = arith.constant 0.000000e+00 : f32
    %39 = vector.broadcast %cst_17 : f32 to vector<16x256xf32>
    %40 = arith.maximumf %38, %39 : vector<16x256xf32>
    %c0_18 = arith.constant 0 : index
    %c0_19 = arith.constant 0 : index
    %41 = vector.load %arg5[%c0_18, %c0_19] : memref<1x256xf32, #tpu.memory_space<vmem>>, vector<1x256xf32>
    %cst_20 = arith.constant dense<0.000000e+00> : vector<1x16xf32>
    %42 = tpu.matmul %41, %40, %cst_20 {dimension_numbers = #tpu.dot_dimension_numbers<[1], [1], [0], [0], [0, 0, 1, 0], [], []>} : vector<1x256xf32>, vector<16x256xf32>, vector<1x16xf32> -> vector<1x16xf32>
    %43 = vector.broadcast %1 : f32 to vector<1x16xf32>
    %44 = arith.addf %42, %43 : vector<1x16xf32>
    %45 = math.tanh %44 : vector<1x16xf32>
    %c0_21 = arith.constant 0 : index
    %c0_22 = arith.constant 0 : index
    %46 = vector.load %arg6[%c0_21, %c0_22] : memref<1x16xf32, #tpu.memory_space<vmem>>, vector<1x16xf32>
    tpu.vector_store %arg6[%c0_21, %c0_22], %45 {strides = array<i32>} : memref<1x16xf32, #tpu.memory_space<vmem>>, vector<1x16xf32>,
    return
  }
  func.func @transform_0(%arg0: i32, %arg1: memref<6xf32, #tpu.memory_space<smem>>) -> (i32, i32, i32) {
    %c0_i32 = arith.constant 0 : i32
    %c0_i32_0 = arith.constant 0 : i32
    %c0_i32_1 = arith.constant 0 : i32
    return %c0_i32, %arg0, %c0_i32_0 : i32, i32, i32
  }
  func.func @transform_1(%arg0: i32, %arg1: memref<6xf32, #tpu.memory_space<smem>>) -> (i32, i32) {
    %c0_i32 = arith.constant 0 : i32
    %c0_i32_0 = arith.constant 0 : i32
    %c0_i32_1 = arith.constant 0 : i32
    return %c0_i32, %c0_i32_0 : i32, i32
  }
  func.func @transform_2(%arg0: i32, %arg1: memref<6xf32, #tpu.memory_space<smem>>) -> (i32, i32) {
    %c0_i32 = arith.constant 0 : i32
    %c0_i32_0 = arith.constant 0 : i32
    %c0_i32_1 = arith.constant 0 : i32
    return %c0_i32, %c0_i32_0 : i32, i32
  }
  func.func @transform_3(%arg0: i32, %arg1: memref<6xf32, #tpu.memory_space<smem>>) -> (i32, i32) {
    %c0_i32 = arith.constant 0 : i32
    %c0_i32_0 = arith.constant 0 : i32
    %c0_i32_1 = arith.constant 0 : i32
    return %c0_i32, %c0_i32_0 : i32, i32
  }
  func.func @transform_4(%arg0: i32, %arg1: memref<6xf32, #tpu.memory_space<smem>>) -> (i32, i32) {
    %c0_i32 = arith.constant 0 : i32
    %c0_i32_0 = arith.constant 0 : i32
    return %c0_i32, %arg0 : i32, i32
  }
}

</mosaic_0001>

<llo_original>
// kernel: tpu_custom_call.1
$region0: #{tpu_custom_call.1}
  #allocation0 [shape = 'u32[]', space=smem, size = 0x4, offset = 0x4, fixed_abs, tag = 'smem constant byte address 0x4 - core index']
  #allocation1 [shape = 'u32[72,128]{1,0:T(1,128)}', space=vmem, size = 0x9000, scoped, tag = 'internal scratch']
  #allocation2 [shape = 's32[1]{0}', space=sflag, size = 0x4, scoped, tag = 'scoped memory for tpu_custom_call.1']
  #allocation3 [shape = 'u8[512]{0}', space=smem, size = 0x200, scoped, tag = 'prefetched SMEM operand 0']
  %s0 = inlined_call_operand.hbm [shape: f32[6], index: 0, kind: input, shape index: {}]
  %s1 = inlined_call_operand.hbm [shape: bf16[4,16,256], index: 1, kind: input, shape index: {}]
  %s2 = inlined_call_operand.hbm [shape: bf16[256,256], index: 2, kind: input, shape index: {}]
  %s3 = inlined_call_operand.vmem [shape: f32[1,256], index: 3, kind: input, shape index: {}]
  %s4 = inlined_call_operand.hbm [shape: f32[1,256], index: 4, kind: input, shape index: {}]
  %s5 = inlined_call_operand.hbm [shape: f32[1,16], index: 5, kind: output, shape index: {}]
  %s6 = sld [smem:[#allocation0]]
  $region38: #{tpu_custom_call.1} parent=0
    _
  %s8 = ssub.s32 1, %s6
  %s9 = scalar_select 0, %s8, %s6
  %s11 = sshll.u32 %s0, 4
  %s12 = int_to_ptr.hbm [resolvable:$true] %s11
  %14 = dma.hbm_to_smem %s12, 16, [#allocation3], [#allocation2]
  %16 = dma.done [#allocation2], 16
  %17 = sfence
  $region1: #{tpu_custom_call.1} parent=0
    #allocation4 [shape = 'u8[32768]{0}', space=vmem, size = 0x8000, scoped, tag = 'input window, operand 1, single buffered']
    #allocation5 [shape = 's32[1]{0}', space=sflag, size = 0x4, scoped, tag = 'scoped memory for tpu_custom_call.1']
    #allocation6 [shape = 's32[1]{0}', space=sflag, size = 0x4, scoped, tag = 'scoped memory for tpu_custom_call.1']
    #allocation7 [shape = 'u8[131072]{0}', space=vmem, size = 0x20000, scoped, tag = 'input window, operand 2, single buffered']
    #allocation8 [shape = 's32[1]{0}', space=sflag, size = 0x4, scoped, tag = 'scoped memory for tpu_custom_call.1']
    #allocation9 [shape = 'u8[1024]{0}', space=vmem, size = 0x400, scoped, tag = 'input window, operand 4, single buffered']
    #allocation10 [shape = 'u8[512]{0}', space=vmem, size = 0x400, scoped, tag = 'output window, operand 0, single buffered']
    %18 = vsyncpa [#allocation5], 0
    %19 = vsyncpa [#allocation8], 0
    %20 = vsyncpa [#allocation6], 0
    // Predicated region
    $region2: #{tpu_custom_call.1} parent=1 // pred_check
      _
    $region3: #{tpu_custom_call.1} parent=1 // pred_check_branch
      %22 = sbr.rel (0) target = $region5
    $region4: #{tpu_custom_call.1} parent=1 // pred_region
      %24 = vsyncadd [#allocation5], 0
      %s25 = sshll.u32 %s1, 4
      %s26 = int_to_ptr.hbm [resolvable:$true] %s25
      %s27 = sshll.u32 [#allocation4], 4
      %s28 = int_to_ptr.vmem [resolvable:$true] %s27
      %33 = dma.hbm_to_vmem [thread:$0]  %s26, 1024, %s28, [#allocation5], 128, 128, 8
    $region5: #{tpu_custom_call.1} parent=1 // pred_fallthru
      _
    // Predicated region
    $region6: #{tpu_custom_call.1} parent=1 // pred_check
      _
    $region7: #{tpu_custom_call.1} parent=1 // pred_check_branch
      %35 = sbr.rel (0) target = $region9
    $region8: #{tpu_custom_call.1} parent=1 // pred_region
      %37 = vsyncadd [#allocation8], 0
      %s38 = sshll.u32 %s2, 4
      %s39 = int_to_ptr.hbm [resolvable:$true] %s38
      %s40 = sshll.u32 [#allocation7], 4
      %s41 = int_to_ptr.vmem [resolvable:$true] %s40
      %46 = dma.hbm_to_vmem [thread:$0]  %s39, 4096, %s41, [#allocation8], 128, 128, 8
    $region9: #{tpu_custom_call.1} parent=1 // pred_fallthru
      _
    // Predicated region
    $region10: #{tpu_custom_call.1} parent=1 // pred_check
      _
    $region11: #{tpu_custom_call.1} parent=1 // pred_check_branch
      %48 = sbr.rel (0) target = $region13
    $region12: #{tpu_custom_call.1} parent=1 // pred_region
      _
    $region13: #{tpu_custom_call.1} parent=1 // pred_fallthru
      _
    // Predicated region
    $region14: #{tpu_custom_call.1} parent=1 // pred_check
      _
    $region15: #{tpu_custom_call.1} parent=1 // pred_check_branch
      %50 = sbr.rel (0) target = $region17
    $region16: #{tpu_custom_call.1} parent=1 // pred_region
      %52 = vsyncadd [#allocation8], 0
      %s54 = sshll.u32 %s4, 4
      %s55 = int_to_ptr.hbm [resolvable:$true] %s54
      %s56 = sshll.u32 [#allocation9], 4
      %s57 = int_to_ptr.vmem [resolvable:$true] %s56
      %59 = dma.hbm_to_vmem [thread:$0]  %s55, 32, %s57, [#allocation8]
    $region17: #{tpu_custom_call.1} parent=1 // pred_fallthru
      _
    // Predicated region
    $region18: #{tpu_custom_call.1} parent=1 // pred_check
      _
    $region19: #{tpu_custom_call.1} parent=1 // pred_check_branch
      %61 = sbr.rel (0) target = $region21
    $region20: #{tpu_custom_call.1} parent=1 // pred_region
      %63 = dma.done [#allocation5], 1024
    $region21: #{tpu_custom_call.1} parent=1 // pred_fallthru
      _
    // Predicated region
    $region22: #{tpu_custom_call.1} parent=1 // pred_check
      _
    $region23: #{tpu_custom_call.1} parent=1 // pred_check_branch
      %65 = sbr.rel (0) target = $region25
    $region24: #{tpu_custom_call.1} parent=1 // pred_region
      %67 = dma.done [#allocation8], 4096
    $region25: #{tpu_custom_call.1} parent=1 // pred_fallthru
      _
    // Predicated region
    $region26: #{tpu_custom_call.1} parent=1 // pred_check
      _
    $region27: #{tpu_custom_call.1} parent=1 // pred_check_branch
      %69 = sbr.rel (0) target = $region29
    $region28: #{tpu_custom_call.1} parent=1 // pred_region
      %71 = dma.done [#allocation8], 32
    $region29: #{tpu_custom_call.1} parent=1 // pred_fallthru
      _
    %s72 = sld [smem:[#allocation3 + $0x4]]
    %s73 = sld [smem:[#allocation3 + $0x5]]
    %s74 = sld [smem:[#allocation3]]
    %v75 = vld [vmem:[#allocation4] sm:$0xff]
    %v76 = vld [vmem:[#allocation4 + $0x8] sm:$0xff]
    %v77 = vunpack.c.l.bf16 %v75
    %v78 = vunpack.c.h.bf16 %v75
    %v79 = vunpack.c.l.bf16 %v76
    %v80 = vunpack.c.h.bf16 %v76
    %v81 = vstv %s74
    %v82 = vmul.f32 %v81, %v77
    %v83 = vmul.f32 %v81, %v78
    %v84 = vmul.f32 %v81, %v79
    %v85 = vmul.f32 %v81, %v80
    %s86 = sld [smem:[#allocation3 + $0x1]]
    %s87 = scalar_lea.vmem [#allocation4], 16
    %v88 = vld [vmem:[%s87] sm:$0xff]
    %v89 = vld [vmem:[%s87 + $0x8] sm:$0xff]
    %v90 = vunpack.c.l.bf16 %v88
    %v91 = vunpack.c.h.bf16 %v88
    %v92 = vunpack.c.l.bf16 %v89
    %v93 = vunpack.c.h.bf16 %v89
    %v94 = vstv %s86
    %v95 = vmul.f32 %v94, %v90
    %v96 = vmul.f32 %v94, %v91
    %v97 = vmul.f32 %v94, %v92
    %v98 = vmul.f32 %v94, %v93
    %v99 = vadd.f32 %v82, %v95
    %v100 = vadd.f32 %v83, %v96
    %v101 = vadd.f32 %v84, %v97
    %v102 = vadd.f32 %v85, %v98
    %s103 = sld [smem:[#allocation3 + $0x2]]
    %s104 = scalar_lea.vmem [#allocation4], 32
    %v105 = vld [vmem:[%s104] sm:$0xff]
    %v106 = vld [vmem:[%s104 + $0x8] sm:$0xff]
    %v107 = vunpack.c.l.bf16 %v105
    %v108 = vunpack.c.h.bf16 %v105
    %v109 = vunpack.c.l.bf16 %v106
    %v110 = vunpack.c.h.bf16 %v106
    %v111 = vstv %s103
    %v112 = vmul.f32 %v111, %v107
    %v113 = vmul.f32 %v111, %v108
    %v114 = vmul.f32 %v111, %v109
    %v115 = vmul.f32 %v111, %v110
    %v116 = vadd.f32 %v99, %v112
    %v117 = vadd.f32 %v100, %v113
    %v118 = vadd.f32 %v101, %v114
    %v119 = vadd.f32 %v102, %v115
    %s120 = sld [smem:[#allocation3 + $0x3]]
    %s121 = scalar_lea.vmem [#allocation4], 48
    %v122 = vld [vmem:[%s121] sm:$0xff]
    %v123 = vld [vmem:[%s121 + $0x8] sm:$0xff]
    %v124 = vunpack.c.l.bf16 %v122
    %v125 = vunpack.c.h.bf16 %v122
    %v126 = vunpack.c.l.bf16 %v123
    %v127 = vunpack.c.h.bf16 %v123
    %v128 = vstv %s120
    %v129 = vmul.f32 %v128, %v124
    %v130 = vmul.f32 %v128, %v125
    %v131 = vmul.f32 %v128, %v126
    %v132 = vmul.f32 %v128, %v127
    %v133 = vadd.f32 %v116, %v129
    %v134 = vadd.f32 %v117, %v130
    %v135 = vadd.f32 %v118, %v131
    %v136 = vadd.f32 %v119, %v132
    %v137 = vstv %s72
    %v138 = vadd.f32 %v133, %v137
    %v139 = vadd.f32 %v134, %v137
    %v140 = vadd.f32 %v135, %v137
    %v141 = vadd.f32 %v136, %v137
    %v142 = vmax.f32 %v138, 0.0
    %v143 = vmax.f32 %v139, 0.0
    %v144 = vmax.f32 %v140, 0.0
    %v145 = vmax.f32 %v141, 0.0
    %v146 = vpack.c.bf16 %v144, %v142
    %v147 = vpack.c.bf16 %v145, %v143
    %v148 = vld [vmem:[#allocation7] sm:$0xff]
    %v149 = vld [vmem:[#allocation7 + $0x8] sm:$0xff]
    %v150 = vld [vmem:[#allocation7 + $0x10] sm:$0xff]
    %v151 = vld [vmem:[#allocation7 + $0x18] sm:$0xff]
    %v152 = vld [vmem:[#allocation7 + $0x20] sm:$0xff]
    %v153 = vld [vmem:[#allocation7 + $0x28] sm:$0xff]
    %v154 = vld [vmem:[#allocation7 + $0x30] sm:$0xff]
    %v155 = vld [vmem:[#allocation7 + $0x38] sm:$0xff]
    %v156 = vld [vmem:[#allocation7 + $0x40] sm:$0xff]
    %v157 = vld [vmem:[#allocation7 + $0x48] sm:$0xff]
    %v158 = vld [vmem:[#allocation7 + $0x50] sm:$0xff]
    %v159 = vld [vmem:[#allocation7 + $0x58] sm:$0xff]
    %v160 = vld [vmem:[#allocation7 + $0x60] sm:$0xff]
    %v161 = vld [vmem:[#allocation7 + $0x68] sm:$0xff]
    %v162 = vld [vmem:[#allocation7 + $0x70] sm:$0xff]
    %v163 = vld [vmem:[#allocation7 + $0x78] sm:$0xff]
    %v164 = vld [vmem:[#allocation7 + $0x80] sm:$0xff]
    %v165 = vld [vmem:[#allocation7 + $0x88] sm:$0xff]
    %v166 = vld [vmem:[#allocation7 + $0x90] sm:$0xff]
    %v167 = vld [vmem:[#allocation7 + $0x98] sm:$0xff]
    %v168 = vld [vmem:[#allocation7 + $0xa0] sm:$0xff]
    %v169 = vld [vmem:[#allocation7 + $0xa8] sm:$0xff]
    %v170 = vld [vmem:[#allocation7 + $0xb0] sm:$0xff]
    %v171 = vld [vmem:[#allocation7 + $0xb8] sm:$0xff]
    %v172 = vld [vmem:[#allocation7 + $0xc0] sm:$0xff]
    %v173 = vld [vmem:[#allocation7 + $0xc8] sm:$0xff]
    %v174 = vld [vmem:[#allocation7 + $0xd0] sm:$0xff]
    %v175 = vld [vmem:[#allocation7 + $0xd8] sm:$0xff]
    %v176 = vld [vmem:[#allocation7 + $0xe0] sm:$0xff]
    %v177 = vld [vmem:[#allocation7 + $0xe8] sm:$0xff]
    %v178 = vld [vmem:[#allocation7 + $0xf0] sm:$0xff]
    %v179 = vld [vmem:[#allocation7 + $0xf8] sm:$0xff]
    %v180 = vld [vmem:[%s3] sm:$0x3]
    %v182 = vperm.slane %v180, 0
    %v183 = vperm.slane %v180, 1
    %v218 = vunpack.c.l.b16 %v148
    %v219 = vunpack.c.h.b16 %v148
    %v220 = vunpack.c.l.b16 %v149
    %v221 = vunpack.c.h.b16 %v149
    %v222 = vunpack.c.l.b16 %v150
    %v223 = vunpack.c.h.b16 %v150
    %v224 = vunpack.c.l.b16 %v151
    %v225 = vunpack.c.h.b16 %v151
    %v226 = vunpack.c.l.b16 %v152
    %v227 = vunpack.c.h.b16 %v152
    %v228 = vunpack.c.l.b16 %v153
    %v229 = vunpack.c.h.b16 %v153
    %v230 = vunpack.c.l.b16 %v154
    %v231 = vunpack.c.h.b16 %v154
    %v232 = vunpack.c.l.b16 %v155
    %v233 = vunpack.c.h.b16 %v155
    %v234 = vunpack.c.l.b16 %v156
    %v235 = vunpack.c.h.b16 %v156
    %v236 = vunpack.c.l.b16 %v157
    %v237 = vunpack.c.h.b16 %v157
    %v238 = vunpack.c.l.b16 %v158
    %v239 = vunpack.c.h.b16 %v158
    %v240 = vunpack.c.l.b16 %v159
    %v241 = vunpack.c.h.b16 %v159
    %v242 = vunpack.c.l.b16 %v160
    %v243 = vunpack.c.h.b16 %v160
    %v244 = vunpack.c.l.b16 %v161
    %v245 = vunpack.c.h.b16 %v161
    %v246 = vunpack.c.l.b16 %v162
    %v247 = vunpack.c.h.b16 %v162
    %v248 = vunpack.c.l.b16 %v163
    %v249 = vunpack.c.h.b16 %v163
    %v250 = vunpack.c.l.b16 %v164
    %v251 = vunpack.c.h.b16 %v164
    %v252 = vunpack.c.l.b16 %v165
    %v253 = vunpack.c.h.b16 %v165
    %v254 = vunpack.c.l.b16 %v166
    %v255 = vunpack.c.h.b16 %v166
    %v256 = vunpack.c.l.b16 %v167
    %v257 = vunpack.c.h.b16 %v167
    %v258 = vunpack.c.l.b16 %v168
    %v259 = vunpack.c.h.b16 %v168
    %v260 = vunpack.c.l.b16 %v169
    %v261 = vunpack.c.h.b16 %v169
    %v262 = vunpack.c.l.b16 %v170
    %v263 = vunpack.c.h.b16 %v170
    %v264 = vunpack.c.l.b16 %v171
    %v265 = vunpack.c.h.b16 %v171
    %v266 = vunpack.c.l.b16 %v172
    %v267 = vunpack.c.h.b16 %v172
    %v268 = vunpack.c.l.b16 %v173
    %v269 = vunpack.c.h.b16 %v173
    %v270 = vunpack.c.l.b16 %v174
    %v271 = vunpack.c.h.b16 %v174
    %v272 = vunpack.c.l.b16 %v175
    %v273 = vunpack.c.h.b16 %v175
    %v274 = vunpack.c.l.b16 %v176
    %v275 = vunpack.c.h.b16 %v176
    %v276 = vunpack.c.l.b16 %v177
    %v277 = vunpack.c.h.b16 %v177
    %v278 = vunpack.c.l.b16 %v178
    %v279 = vunpack.c.h.b16 %v178
    %v280 = vunpack.c.l.b16 %v179
    %v281 = vunpack.c.h.b16 %v179
    %v282 = vpack.c.b16 %v220, %v218
    %v283 = vpack.c.b16 %v221, %v219
    %v284 = vpack.c.b16 %v224, %v222
    %v285 = vpack.c.b16 %v225, %v223
    %v286 = vpack.c.b16 %v228, %v226
    %v287 = vpack.c.b16 %v229, %v227
    %v288 = vpack.c.b16 %v232, %v230
    %v289 = vpack.c.b16 %v233, %v231
    %v290 = vpack.c.b16 %v236, %v234
    %v291 = vpack.c.b16 %v237, %v235
    %v292 = vpack.c.b16 %v240, %v238
    %v293 = vpack.c.b16 %v241, %v239
    %v294 = vpack.c.b16 %v244, %v242
    %v295 = vpack.c.b16 %v245, %v243
    %v296 = vpack.c.b16 %v248, %v246
    %v297 = vpack.c.b16 %v249, %v247
    %v298 = vpack.c.b16 %v252, %v250
    %v299 = vpack.c.b16 %v253, %v251
    %v300 = vpack.c.b16 %v256, %v254
    %v301 = vpack.c.b16 %v257, %v255
    %v302 = vpack.c.b16 %v260, %v258
    %v303 = vpack.c.b16 %v261, %v259
    %v304 = vpack.c.b16 %v264, %v262
    %v305 = vpack.c.b16 %v265, %v263
    %v306 = vpack.c.b16 %v268, %v266
    %v307 = vpack.c.b16 %v269, %v267
    %v308 = vpack.c.b16 %v272, %v270
    %v309 = vpack.c.b16 %v273, %v271
    %v310 = vpack.c.b16 %v276, %v274
    %v311 = vpack.c.b16 %v277, %v275
    %v312 = vpack.c.b16 %v280, %v278
    %v313 = vpack.c.b16 %v281, %v279
    %346 = vmatpush.bf16.msra.mxu0 %v296
    %347 = vmatpush.bf16.msra.mxu0 %v294
    %348 = vmatpush.bf16.msra.mxu0 %v292
    %349 = vmatpush.bf16.msra.mxu0 %v290
    %350 = vmatpush.bf16.msra.mxu0 %v288
    %351 = vmatpush.bf16.msra.mxu0 %v286
    %352 = vmatpush.bf16.msra.mxu0 %v284
    %353 = vmatpush.bf16.msra.mxu0 %v282
    %354 = vmatmul.bf16.gmra.mxu0 %v146
    %v355 = vpop.f32.mrf.mxu0
    %v356 = vadd.f32 %v182, %v355
    %v357 = vpop.f32.mrf.mxu0
    %v358 = vadd.f32 %v182, %v357
    %359 = vdwg.mxu0
    %360 = vmatpush.bf16.msra.mxu0 %v312
    %361 = vmatpush.bf16.msra.mxu0 %v310
    %362 = vmatpush.bf16.msra.mxu0 %v308
    %363 = vmatpush.bf16.msra.mxu0 %v306
    %364 = vmatpush.bf16.msra.mxu0 %v304
    %365 = vmatpush.bf16.msra.mxu0 %v302
    %366 = vmatpush.bf16.msra.mxu0 %v300
    %367 = vmatpush.bf16.msra.mxu0 %v298
    %368 = vmatmul.bf16.gmra.mxu0 %v147
    %v369 = vpop.f32.mrf.mxu0
    %v370 = vadd.f32 %v356, %v369
    %v371 = vpop.f32.mrf.mxu0
    %v372 = vadd.f32 %v358, %v371
    %373 = vdwg.mxu0
    %374 = vmatpush.bf16.msra.mxu0 %v297
    %375 = vmatpush.bf16.msra.mxu0 %v295
    %376 = vmatpush.bf16.msra.mxu0 %v293
    %377 = vmatpush.bf16.msra.mxu0 %v291
    %378 = vmatpush.bf16.msra.mxu0 %v289
    %379 = vmatpush.bf16.msra.mxu0 %v287
    %380 = vmatpush.bf16.msra.mxu0 %v285
    %381 = vmatpush.bf16.msra.mxu0 %v283
    %382 = vmatmul.bf16.gmra.mxu0 %v146
    %v383 = vpop.f32.mrf.mxu0
    %v384 = vadd.f32 %v183, %v383
    %v385 = vpop.f32.mrf.mxu0
    %v386 = vadd.f32 %v183, %v385
    %387 = vdwg.mxu0
    %388 = vmatpush.bf16.msra.mxu0 %v313
    %389 = vmatpush.bf16.msra.mxu0 %v311
    %390 = vmatpush.bf16.msra.mxu0 %v309
    %391 = vmatpush.bf16.msra.mxu0 %v307
    %392 = vmatpush.bf16.msra.mxu0 %v305
    %393 = vmatpush.bf16.msra.mxu0 %v303
    %394 = vmatpush.bf16.msra.mxu0 %v301
    %395 = vmatpush.bf16.msra.mxu0 %v299
    %396 = vmatmul.bf16.gmra.mxu0 %v147
    %v397 = vpop.f32.mrf.mxu0
    %v398 = vadd.f32 %v384, %v397
    %v399 = vpop.f32.mrf.mxu0
    %v400 = vadd.f32 %v386, %v399
    %401 = vdwg.mxu0
    %v402 = vmax.f32 %v370, 0.0
    %v403 = vmax.f32 %v398, 0.0
    %v404 = vmax.f32 %v372, 0.0
    %v405 = vmax.f32 %v400, 0.0
    %v406 = vld [vmem:[#allocation9] sm:$0x3]
    %v407 = vstv %s73
    %v409 = vperm.slane %v406, 0
    %v410 = vperm.slane %v406, 1
    %413 = vmatpush.xpose.msra.mxu0 0.0
    %414 = vmatpush.xpose.msra.mxu0 0.0
    %415 = vmatpush.xpose.msra.mxu0 0.0
    %416 = vmatpush.xpose.msra.mxu0 0.0
    %417 = vmatpush.xpose.msra.mxu0 0.0
    %418 = vmatpush.xpose.msra.mxu0 0.0
    %419 = vmatpush.xpose.msra.mxu0 0.0
    %420 = vmatpush.xpose.msra.mxu0 0.0
    %421 = vmatpush.xpose.msra.mxu0 0.0
    %422 = vmatpush.xpose.msra.mxu0 0.0
    %423 = vmatpush.xpose.msra.mxu0 0.0
    %424 = vmatpush.xpose.msra.mxu0 0.0
    %425 = vmatpush.xpose.msra.mxu0 0.0
    %426 = vmatpush.xpose.msra.mxu0 0.0
    %427 = vmatpush.xpose.msra.mxu0 %v404
    %428 = vmatpush.xpose.msra.mxu0 %v402
    %429 = vmatmul.f32.gmra.mxu0 %v409
    %v430 = vpop.f32.mrf.mxu0
    %v431 = vadd.f32 %v407, %v430
    %432 = vdwg.mxu0
    %433 = vmatpush.xpose.msra.mxu0 0.0
    %434 = vmatpush.xpose.msra.mxu0 0.0
    %435 = vmatpush.xpose.msra.mxu0 0.0
    %436 = vmatpush.xpose.msra.mxu0 0.0
    %437 = vmatpush.xpose.msra.mxu0 0.0
    %438 = vmatpush.xpose.msra.mxu0 0.0
    %439 = vmatpush.xpose.msra.mxu0 0.0
    %440 = vmatpush.xpose.msra.mxu0 0.0
    %441 = vmatpush.xpose.msra.mxu0 0.0
    %442 = vmatpush.xpose.msra.mxu0 0.0
    %443 = vmatpush.xpose.msra.mxu0 0.0
    %444 = vmatpush.xpose.msra.mxu0 0.0
    %445 = vmatpush.xpose.msra.mxu0 0.0
    %446 = vmatpush.xpose.msra.mxu0 0.0
    %447 = vmatpush.xpose.msra.mxu0 %v405
    %448 = vmatpush.xpose.msra.mxu0 %v403
    %449 = vmatmul.f32.gmra.mxu0 %v410
    %v450 = vpop.f32.mrf.mxu0
    %v451 = vadd.f32 %v431, %v450
    %452 = vdwg.mxu0
    %v453 = vtanh.pop %v451
    %vm454 = vcmask 122880
    %455 = vst.msk [vmem:[#allocation10] sm:$0x1] %vm454, %v453
    // Predicated region
    $region30: #{tpu_custom_call.1} parent=1 // pred_check
      _
    $region31: #{tpu_custom_call.1} parent=1 // pred_check_branch
      %457 = sbr.rel (0) target = $region33
    $region32: #{tpu_custom_call.1} parent=1 // pred_region
      %459 = vsyncadd [#allocation6], 0
      %s461 = sshll.u32 [#allocation10], 4
      %s462 = int_to_ptr.vmem [resolvable:$true] %s461
      %s463 = sshll.u32 %s5, 4
      %s464 = int_to_ptr.hbm [resolvable:$true] %s463
      %466 = dma.vmem_to_hbm [thread:$0]  %s462, 16, %s464, [#allocation6]
    $region33: #{tpu_custom_call.1} parent=1 // pred_fallthru
      _
    // Predicated region
    $region34: #{tpu_custom_call.1} parent=1 // pred_check
      _
    $region35: #{tpu_custom_call.1} parent=1 // pred_check_branch
      %468 = sbr.rel (0) target = $region37
    $region36: #{tpu_custom_call.1} parent=1 // pred_region
      %470 = dma.done [#allocation6], 16
    $region37: #{tpu_custom_call.1} parent=1 // pred_fallthru
      _
    %471 = vsyncpa [#allocation5], 1
    %472 = vsyncpa [#allocation8], 1
    %473 = vsyncpa [#allocation6], 1

</llo_original>
